<compile_context>
chip_gen: v5e
topology: v5e:2x2
jax: 0.10.0
libtpu: 0.0.40
codegen_flags: <defaults>
</compile_context>

<pallas_src>
import jax
import jax.numpy as jnp
from jax.experimental import pallas as pl
from jax.experimental.pallas import tpu as pltpu


def _round_up(x, m):
    return ((x + m - 1) // m) * m


def _pad2(a, rows, cols):
    return jnp.pad(a, ((0, rows - a.shape[0]), (0, cols - a.shape[1])))


def _mlp_kernel(x_ref, w1_ref, b1_ref, w2_ref, b2_ref, w3_ref, b3_ref, o_ref):
    # x: (TB, d_in)   w1: (d_in, Hp)  b1: (1, Hp)
    # w2: (Hp, Hp)    b2: (1, Hp)     w3: (Hp, d_out)  b3: (1, d_out)
    # o:  (TB, d_out)
    cdt = w2_ref.dtype  # MXU-input dtype (f32 or bf16); accumulation is f32.

    # ---- layer 1: single fused dot (concat done once in the wrapper) ----
    h = jnp.dot(x_ref[...].astype(cdt), w1_ref[...],
                preferred_element_type=jnp.float32) + b1_ref[...]
    h = jnp.maximum(h, 0.0)

    # ---- layer 2 (activation kept as SSA value, no VMEM scratch round-trip) ----
    h = jnp.dot(h.astype(cdt), w2_ref[...],
                preferred_element_type=jnp.float32) + b2_ref[...]
    h = jnp.maximum(h, 0.0)

    # ---- layer 3: store directly at (TB, d_out), no 128-lane output padding ----
    o = jnp.dot(h.astype(cdt), w3_ref[...],
                preferred_element_type=jnp.float32) + b3_ref[...]
    o_ref[...] = o.astype(o_ref.dtype)


def init_params(key, state_dim, reward_dim, condition_dim, hidden_dim):
    """Plain (unpadded) parameters, matching the torch Linear layout."""
    d_in = state_dim + reward_dim + condition_dim + 1
    d_out = state_dim + reward_dim
    ks = jax.random.split(key, 6)

    def lin(kw, kb, fan_in, fan_out):
        bound = 1.0 / jnp.sqrt(fan_in)
        w = jax.random.uniform(kw, (fan_in, fan_out), jnp.float32, -bound, bound)
        b = jax.random.uniform(kb, (1, fan_out), jnp.float32, -bound, bound)
        return w, b

    w1, b1 = lin(ks[0], ks[1], d_in, hidden_dim)
    w2, b2 = lin(ks[2], ks[3], hidden_dim, hidden_dim)
    w3, b3 = lin(ks[4], ks[5], hidden_dim, d_out)
    return (w1, b1, w2, b2, w3, b3)


def prepare_params(params, compute_dtype=jnp.float32):
    """One-time prep: zero-pad the hidden dim to 128 lanes; d_in/d_out stay raw.

    compute_dtype is the MXU-input storage dtype.  bf16 is recommended on
    v5e/v6e/v7x (full-rate bf16 MXU, f32 accumulate) -- note it rounds the
    raw-integer timestep feature in layer 1; keep f32 if that matters.
    """
    w1, b1, w2, b2, w3, b3 = params
    d_in, H = w1.shape
    d_out = w3.shape[1]
    Hp = _round_up(H, 128)
    return dict(
        w1=_pad2(w1, d_in, Hp).astype(compute_dtype),
        b1=_pad2(b1, 1, Hp).astype(jnp.float32),
        w2=_pad2(w2, Hp, Hp).astype(compute_dtype),
        b2=_pad2(b2, 1, Hp).astype(jnp.float32),
        w3=_pad2(w3, Hp, d_out).astype(compute_dtype),
        b3=b3.astype(jnp.float32),
        d_in=d_in,
        d_out=d_out,
    )


def conditional_diffusion_forward(states, rewards, condition, t, p):
    """Forward pass matching the PyTorch module semantics.

    states:    (B, state_dim)  (flattened if >2-D, like the torch .view)
    rewards:   (B, reward_dim)
    condition: (B,) -> unsqueezed to (B, 1)
    t:         (B,) -> unsqueezed to (B, 1)
    p:         output of prepare_params()
    returns:   (B, state_dim + reward_dim) float32
    """
    if states.ndim > 2:
        states = states.reshape(states.shape[0], -1)
    if rewards.ndim > 2:
        rewards = rewards.reshape(rewards.shape[0], -1)

    x = jnp.concatenate(
        [states.astype(jnp.float32),
         rewards.astype(jnp.float32),
         condition[..., None].astype(jnp.float32),
         t[..., None].astype(jnp.float32)],
        axis=-1)

    B, d_in = x.shape
    assert d_in == p["d_in"], (d_in, p["d_in"])
    Hp = p["w2"].shape[0]
    d_out = p["d_out"]

    # Batch tiling:
    #  * large B: 512-row tiles (sweep 512-1024; huge VMEM headroom remains)
    #  * small/medium B: exactly 2 tiles so the "parallel" axis shards across
    #    both v7x TensorCores (harmless on single-TC v5e/v6e).
    if B >= 1024:
        TB = 512
        Bp = _round_up(B, TB)
    else:
        TB = _round_up(pl.cdiv(B, 2), 8)
        Bp = 2 * TB
    if Bp != B:
        x = jnp.pad(x, ((0, Bp - B), (0, 0)))

    grid = (Bp // TB,)

    def row(i):
        return (i, 0)

    def const(i):
        return (0, 0)

    weight_keys = ("w1", "b1", "w2", "b2", "w3", "b3")
    weight_bytes = sum(int(p[k].size) * jnp.dtype(p[k].dtype).itemsize
                       for k in weight_keys)
    flops = 2 * Bp * (d_in * Hp + Hp * Hp + Hp * d_out) + 4 * Bp * Hp
    bytes_accessed = int(x.size) * 4 + weight_bytes + Bp * d_out * 4

    # Rough per-call VMEM need: double-buffered x/out tiles, double-buffered
    # (constant-index, never re-fetched) weights, f32 activation working set.
    needed = (2 * weight_bytes
              + 2 * (TB * d_in * 4 + TB * d_out * 4)
              + 3 * TB * Hp * 4)
    compiler_kwargs = dict(dimension_semantics=("parallel",))
    if needed > (24 << 20):
        # Large hidden_dim configs (e.g. >=1024): raise the scoped VMEM limit
        # (budget chosen with v7x's 64 MiB physical VMEM in mind).
        compiler_kwargs["vmem_limit_bytes"] = int(min(needed + (8 << 20), 56 << 20))

    # TODO(synk): for the T-step diffusion sampling loop, hoist weight DMA and
    # kernel launch out of the loop (persistent kernel iterating over steps, or
    # cross-call VMEM/semaphore futures) instead of one pallas_call per step.
    out = pl.pallas_call(
        _mlp_kernel,
        out_shape=jax.ShapeDtypeStruct((Bp, d_out), jnp.float32),
        grid_spec=pltpu.PrefetchScalarGridSpec(
            num_scalar_prefetch=0,
            grid=grid,
            in_specs=[
                pl.BlockSpec((TB, d_in), row),      # x tile
                pl.BlockSpec((d_in, Hp), const),    # w1 (VMEM-resident)
                pl.BlockSpec((1, Hp), const),       # b1
                pl.BlockSpec((Hp, Hp), const),      # w2
                pl.BlockSpec((1, Hp), const),       # b2
                pl.BlockSpec((Hp, d_out), const),   # w3
                pl.BlockSpec((1, d_out), const),    # b3
            ],
            out_specs=pl.BlockSpec((TB, d_out), row),
        ),
        compiler_params=pltpu.CompilerParams(**compiler_kwargs),
        cost_estimate=pl.CostEstimate(flops=flops, transcendentals=0,
                                      bytes_accessed=bytes_accessed),
    )(x, p["w1"], p["b1"], p["w2"], p["b2"], p["w3"], p["b3"])

    return out[:B] if Bp != B else out


if __name__ == "__main__":
    # Small, deterministic example shapes consistent with the module.
    B = 8
    state_dim = 16
    reward_dim = 4
    condition_dim = 1
    hidden_dim = 32

    key = jax.random.PRNGKey(0)
    k_params, k_s, k_r, k_t = jax.random.split(key, 4)

    params = init_params(k_params, state_dim, reward_dim, condition_dim, hidden_dim)
    prepared = prepare_params(params, compute_dtype=jnp.float32)

    states = jax.random.normal(k_s, (B, state_dim), jnp.float32)
    rewards = jax.random.normal(k_r, (B, reward_dim), jnp.float32)
    condition = jnp.full((B,), 5.0, jnp.float32)   # mirrors the scripted condition=5.0
    t = jax.random.randint(k_t, (B,), 0, 1000).astype(jnp.float32)

    out = conditional_diffusion_forward(states, rewards, condition, t, prepared)
    jax.block_until_ready(out)

    # Reference check against plain JAX MLP (unpadded weights).
    w1, b1, w2, b2, w3, b3 = params
    x = jnp.concatenate([states, rewards, condition[:, None], t[:, None]], axis=-1)
    ref = jnp.maximum(x @ w1 + b1, 0.0)
    ref = jnp.maximum(ref @ w2 + b2, 0.0)
    ref = ref @ w3 + b3

    assert out.shape == (B, state_dim + reward_dim)
    assert jnp.allclose(out, ref, atol=1e-3, rtol=1e-4), float(
        jnp.max(jnp.abs(out - ref)))

    print("KERNEL_OK")
</pallas_src>

<mosaic_0001>
module attributes {stable_mosaic.version = 11 : i64} {
  func.func @_mlp_kernel(%arg0: i32, %arg1: memref<8x22xf32, #tpu.memory_space<vmem>>, %arg2: memref<22x128xf32, #tpu.memory_space<vmem>>, %arg3: memref<1x128xf32, #tpu.memory_space<vmem>>, %arg4: memref<128x128xf32, #tpu.memory_space<vmem>>, %arg5: memref<1x128xf32, #tpu.memory_space<vmem>>, %arg6: memref<128x20xf32, #tpu.memory_space<vmem>>, %arg7: memref<1x20xf32, #tpu.memory_space<vmem>>, %arg8: memref<8x20xf32, #tpu.memory_space<vmem>>) attributes {dimension_semantics = [#tpu.dimension_semantics<parallel>], iteration_bounds = array<i64: 2>, scalar_prefetch = 0 : i64, scratch_operands = 0 : i64, tpu.core_type = #tpu.core_type<tc>, window_params = [{transform_indices = @transform_0, window_bounds = array<i64: 8, 22>}, {pipeline_mode = #tpu.pipeline_mode<synchronous>, transform_indices = @transform_1, window_bounds = array<i64: 22, 128>}, {pipeline_mode = #tpu.pipeline_mode<synchronous>, transform_indices = @transform_2, window_bounds = array<i64: 1, 128>}, {pipeline_mode = #tpu.pipeline_mode<synchronous>, transform_indices = @transform_3, window_bounds = array<i64: 128, 128>}, {pipeline_mode = #tpu.pipeline_mode<synchronous>, transform_indices = @transform_4, window_bounds = array<i64: 1, 128>}, {pipeline_mode = #tpu.pipeline_mode<synchronous>, transform_indices = @transform_5, window_bounds = array<i64: 128, 20>}, {pipeline_mode = #tpu.pipeline_mode<synchronous>, transform_indices = @transform_6, window_bounds = array<i64: 1, 20>}, {transform_indices = @transform_7, window_bounds = array<i64: 8, 20>}]} {
    %c0 = arith.constant 0 : index
    %c0_0 = arith.constant 0 : index
    %0 = vector.load %arg1[%c0, %c0_0] : memref<8x22xf32, #tpu.memory_space<vmem>>, vector<8x22xf32>
    %c0_1 = arith.constant 0 : index
    %c0_2 = arith.constant 0 : index
    %1 = vector.load %arg2[%c0_1, %c0_2] : memref<22x128xf32, #tpu.memory_space<vmem>>, vector<22x128xf32>
    %cst = arith.constant dense<0.000000e+00> : vector<8x128xf32>
    %2 = tpu.matmul %0, %1, %cst {dimension_numbers = #tpu.dot_dimension_numbers<[1], [0], [0], [1], [0, 0, 1, 1], [], []>} : vector<8x22xf32>, vector<22x128xf32>, vector<8x128xf32> -> vector<8x128xf32>
    %c0_3 = arith.constant 0 : index
    %c0_4 = arith.constant 0 : index
    %3 = vector.load %arg3[%c0_3, %c0_4] : memref<1x128xf32, #tpu.memory_space<vmem>>, vector<1x128xf32>
    %4 = vector.broadcast %3 : vector<1x128xf32> to vector<8x128xf32>
    %5 = arith.addf %2, %4 : vector<8x128xf32>
    %cst_5 = arith.constant 0.000000e+00 : f32
    %6 = vector.broadcast %cst_5 : f32 to vector<8x128xf32>
    %7 = arith.maximumf %5, %6 : vector<8x128xf32>
    %c0_6 = arith.constant 0 : index
    %c0_7 = arith.constant 0 : index
    %8 = vector.load %arg4[%c0_6, %c0_7] : memref<128x128xf32, #tpu.memory_space<vmem>>, vector<128x128xf32>
    %cst_8 = arith.constant dense<0.000000e+00> : vector<8x128xf32>
    %9 = tpu.matmul %7, %8, %cst_8 {dimension_numbers = #tpu.dot_dimension_numbers<[1], [0], [0], [1], [0, 0, 1, 1], [], []>} : vector<8x128xf32>, vector<128x128xf32>, vector<8x128xf32> -> vector<8x128xf32>
    %c0_9 = arith.constant 0 : index
    %c0_10 = arith.constant 0 : index
    %10 = vector.load %arg5[%c0_9, %c0_10] : memref<1x128xf32, #tpu.memory_space<vmem>>, vector<1x128xf32>
    %11 = vector.broadcast %10 : vector<1x128xf32> to vector<8x128xf32>
    %12 = arith.addf %9, %11 : vector<8x128xf32>
    %cst_11 = arith.constant 0.000000e+00 : f32
    %13 = vector.broadcast %cst_11 : f32 to vector<8x128xf32>
    %14 = arith.maximumf %12, %13 : vector<8x128xf32>
    %c0_12 = arith.constant 0 : index
    %c0_13 = arith.constant 0 : index
    %15 = vector.load %arg6[%c0_12, %c0_13] : memref<128x20xf32, #tpu.memory_space<vmem>>, vector<128x20xf32>
    %cst_14 = arith.constant dense<0.000000e+00> : vector<8x20xf32>
    %16 = tpu.matmul %14, %15, %cst_14 {dimension_numbers = #tpu.dot_dimension_numbers<[1], [0], [0], [1], [0, 0, 1, 1], [], []>} : vector<8x128xf32>, vector<128x20xf32>, vector<8x20xf32> -> vector<8x20xf32>
    %c0_15 = arith.constant 0 : index
    %c0_16 = arith.constant 0 : index
    %17 = vector.load %arg7[%c0_15, %c0_16] : memref<1x20xf32, #tpu.memory_space<vmem>>, vector<1x20xf32>
    %18 = vector.broadcast %17 : vector<1x20xf32> to vector<8x20xf32>
    %19 = arith.addf %16, %18 : vector<8x20xf32>
    %c0_17 = arith.constant 0 : index
    %c0_18 = arith.constant 0 : index
    %20 = vector.load %arg8[%c0_17, %c0_18] : memref<8x20xf32, #tpu.memory_space<vmem>>, vector<8x20xf32>
    tpu.vector_store %arg8[%c0_17, %c0_18], %19 {strides = array<i32>} : memref<8x20xf32, #tpu.memory_space<vmem>>, vector<8x20xf32>,
    return
  }
  func.func @transform_0(%arg0: i32) -> (i32, i32) {
    %c0_i32 = arith.constant 0 : i32
    %c0_i32_0 = arith.constant 0 : i32
    return %arg0, %c0_i32 : i32, i32
  }
  func.func @transform_1(%arg0: i32) -> (i32, i32) {
    %c0_i32 = arith.constant 0 : i32
    %c0_i32_0 = arith.constant 0 : i32
    %c0_i32_1 = arith.constant 0 : i32
    return %c0_i32, %c0_i32_0 : i32, i32
  }
  func.func @transform_2(%arg0: i32) -> (i32, i32) {
    %c0_i32 = arith.constant 0 : i32
    %c0_i32_0 = arith.constant 0 : i32
    %c0_i32_1 = arith.constant 0 : i32
    return %c0_i32, %c0_i32_0 : i32, i32
  }
  func.func @transform_3(%arg0: i32) -> (i32, i32) {
    %c0_i32 = arith.constant 0 : i32
    %c0_i32_0 = arith.constant 0 : i32
    %c0_i32_1 = arith.constant 0 : i32
    return %c0_i32, %c0_i32_0 : i32, i32
  }
  func.func @transform_4(%arg0: i32) -> (i32, i32) {
    %c0_i32 = arith.constant 0 : i32
    %c0_i32_0 = arith.constant 0 : i32
    %c0_i32_1 = arith.constant 0 : i32
    return %c0_i32, %c0_i32_0 : i32, i32
  }
  func.func @transform_5(%arg0: i32) -> (i32, i32) {
    %c0_i32 = arith.constant 0 : i32
    %c0_i32_0 = arith.constant 0 : i32
    %c0_i32_1 = arith.constant 0 : i32
    return %c0_i32, %c0_i32_0 : i32, i32
  }
  func.func @transform_6(%arg0: i32) -> (i32, i32) {
    %c0_i32 = arith.constant 0 : i32
    %c0_i32_0 = arith.constant 0 : i32
    %c0_i32_1 = arith.constant 0 : i32
    return %c0_i32, %c0_i32_0 : i32, i32
  }
  func.func @transform_7(%arg0: i32) -> (i32, i32) {
    %c0_i32 = arith.constant 0 : i32
    %c0_i32_0 = arith.constant 0 : i32
    return %arg0, %c0_i32 : i32, i32
  }
}

</mosaic_0001>

<llo_original>
// kernel: tpu_custom_call.1
$region0: #{tpu_custom_call.1}
  #allocation0 [shape = 'u32[]', space=smem, size = 0x4, offset = 0x4, fixed_abs, tag = 'smem constant byte address 0x4 - core index']
  #allocation1 [shape = 'u32[72,128]{1,0:T(1,128)}', space=vmem, size = 0x9000, scoped, tag = 'internal scratch']
  %s0 = inlined_call_operand.hbm [shape: f32[16,22], index: 0, kind: input, shape index: {}]
  %s1 = inlined_call_operand.vmem [shape: f32[22,128], index: 1, kind: input, shape index: {}]
  %s2 = inlined_call_operand.vmem [shape: f32[1,128], index: 2, kind: input, shape index: {}]
  %s3 = inlined_call_operand.vmem [shape: f32[128,128], index: 3, kind: input, shape index: {}]
  %s4 = inlined_call_operand.vmem [shape: f32[1,128], index: 4, kind: input, shape index: {}]
  %s5 = inlined_call_operand.vmem [shape: f32[128,20], index: 5, kind: input, shape index: {}]
  %s6 = inlined_call_operand.vmem [shape: f32[1,20], index: 6, kind: input, shape index: {}]
  %s7 = inlined_call_operand.hbm [shape: f32[16,20], index: 7, kind: output, shape index: {}]
  %s8 = sld [smem:[#allocation0]]
  $region65: #{tpu_custom_call.1} parent=0
    _
  %s10 = ssub.s32 1, %s8
  %s11 = scalar_select 0, %s10, %s8
  $region1: #{tpu_custom_call.1} parent=0
    #allocation2 [shape = 'u8[8192]{0}', space=vmem, size = 0x2000, scoped, tag = 'input window, operand 0']
    #allocation3 [shape = 's32[2]{0}', space=sflag, size = 0x8, scoped, tag = 'scoped memory for tpu_custom_call.1']
    #allocation4 [shape = 's32[2]{0}', space=sflag, size = 0x8, scoped, tag = 'scoped memory for tpu_custom_call.1']
    #allocation5 [shape = 'u8[8192]{0}', space=vmem, size = 0x2000, scoped, tag = 'output window, operand 0']
    %12 = vsyncpa [#allocation3], 0
    %s13 = scalar_lea.sflag [#allocation3], 1
    %14 = vsyncpa %s13, 0
    %15 = vsyncpa [#allocation4], 0
    %s16 = scalar_lea.sflag [#allocation4], 1
    %17 = vsyncpa %s16, 0
    loop: start=0, step=1, limit=4
    $region2: #{tpu_custom_call.1} parent=1 // loop_pre_header
      _
    $region3: #{tpu_custom_call.1} parent=1 // loop_header
      %s19 = sphi 0, %s23
      %p20 = scmp.ge.s32.totalorder %s19, 4
      %s29 = sphi 0, %s31
      %s32 = sphi 0, %s29
      %s33 = sphi 0, %s32
      %s49 = sphi 0, %s33
      %s53 = sphi 0, %s53
      %s55 = sphi 0, %s53
      %s56 = sphi 0, %s55
      %s70 = sphi 0, %s56
      %s74 = sphi 0, %s74
      %s76 = sphi 0, %s74
      %s77 = sphi 0, %s76
      %s91 = sphi 0, %s77
      %s95 = sphi 0, %s95
      %s97 = sphi 0, %s95
      %s98 = sphi 0, %s97
      %s112 = sphi 0, %s98
      %s116 = sphi 0, %s116
      %s118 = sphi 0, %s116
      %s119 = sphi 0, %s118
      %s133 = sphi 0, %s119
      %s137 = sphi 0, %s137
      %s139 = sphi 0, %s137
      %s140 = sphi 0, %s139
      %s154 = sphi 0, %s140
      %s158 = sphi 0, %s158
      %s160 = sphi 0, %s158
      %s161 = sphi 0, %s160
      %s175 = sphi 0, %s161
      %s181 = sphi 0, %s183
      %s184 = sphi 0, %s181
      %s185 = sphi 0, %s184
      %s201 = sphi 0, %s185
    $region4: #{tpu_custom_call.1} parent=1 // loop_header_branch
      %22 = sbr.rel (%p20) target = $region8
    $region5: #{tpu_custom_call.1} parent=1 // loop_body
      %s24 = ssub.s32 %s19, 1
      %s25 = ssub.s32 %s19, 2
      %s26 = sadd.s32 %s19, 1
      %s27 = ssub.s32 %s19, %s26
      %p28 = scmp.eq.s32.totalorder %s27, 0
      %s30 = sadd.s32 %s29, 1
      %s31 = scalar_select %p28, %s29, %s30
      %p34 = pneg %p28
      %p35 = scmp.eq.s32.totalorder %s19, 1
      %p36 = por %p34, %p35
      %p37 = scmp.ne.s32.totalorder %s29, %s32
      %p38 = scmp.eq.s32.totalorder %s19, 0
      %p39 = por %p37, %p38
      %p40 = scmp.ne.s32.totalorder %s29, %s32
      %p41 = scmp.eq.s32.totalorder %s24, 1
      %p42 = por %p40, %p41
      %p43 = scmp.ne.s32.totalorder %s32, %s33
      %p44 = scmp.eq.s32.totalorder %s24, 0
      %p45 = por %p43, %p44
      %p46 = scmp.ne.s32.totalorder %s32, %s33
      %p47 = scmp.eq.s32.totalorder %s25, 1
      %p48 = por %p46, %p47
      %p50 = scmp.ne.s32.totalorder %s33, %s49
      %p51 = scmp.eq.s32.totalorder %s25, 0
      %p52 = por %p50, %p51
      %s54 = sadd.s32 %s53, 1
      %p57 = scmp.eq.s32.totalorder %s19, 1
      %p58 = scmp.ne.s32.totalorder %s53, %s55
      %p59 = scmp.eq.s32.totalorder %s19, 0
      %p60 = por %p58, %p59
      %p61 = scmp.ne.s32.totalorder %s53, %s55
      %p62 = scmp.eq.s32.totalorder %s24, 1
      %p63 = por %p61, %p62
      %p64 = scmp.ne.s32.totalorder %s55, %s56
      %p65 = scmp.eq.s32.totalorder %s24, 0
      %p66 = por %p64, %p65
      %p67 = scmp.ne.s32.totalorder %s55, %s56
      %p68 = scmp.eq.s32.totalorder %s25, 1
      %p69 = por %p67, %p68
      %p71 = scmp.ne.s32.totalorder %s56, %s70
      %p72 = scmp.eq.s32.totalorder %s25, 0
      %p73 = por %p71, %p72
      %s75 = sadd.s32 %s74, 1
      %p78 = scmp.eq.s32.totalorder %s19, 1
      %p79 = scmp.ne.s32.totalorder %s74, %s76
      %p80 = scmp.eq.s32.totalorder %s19, 0
      %p81 = por %p79, %p80
      %p82 = scmp.ne.s32.totalorder %s74, %s76
      %p83 = scmp.eq.s32.totalorder %s24, 1
      %p84 = por %p82, %p83
      %p85 = scmp.ne.s32.totalorder %s76, %s77
      %p86 = scmp.eq.s32.totalorder %s24, 0
      %p87 = por %p85, %p86
      %p88 = scmp.ne.s32.totalorder %s76, %s77
      %p89 = scmp.eq.s32.totalorder %s25, 1
      %p90 = por %p88, %p89
      %p92 = scmp.ne.s32.totalorder %s77, %s91
      %p93 = scmp.eq.s32.totalorder %s25, 0
      %p94 = por %p92, %p93
      %s96 = sadd.s32 %s95, 1
      %p99 = scmp.eq.s32.totalorder %s19, 1
      %p100 = scmp.ne.s32.totalorder %s95, %s97
      %p101 = scmp.eq.s32.totalorder %s19, 0
      %p102 = por %p100, %p101
      %p103 = scmp.ne.s32.totalorder %s95, %s97
      %p104 = scmp.eq.s32.totalorder %s24, 1
      %p105 = por %p103, %p104
      %p106 = scmp.ne.s32.totalorder %s97, %s98
      %p107 = scmp.eq.s32.totalorder %s24, 0
      %p108 = por %p106, %p107
      %p109 = scmp.ne.s32.totalorder %s97, %s98
      %p110 = scmp.eq.s32.totalorder %s25, 1
      %p111 = por %p109, %p110
      %p113 = scmp.ne.s32.totalorder %s98, %s112
      %p114 = scmp.eq.s32.totalorder %s25, 0
      %p115 = por %p113, %p114
      %s117 = sadd.s32 %s116, 1
      %p120 = scmp.eq.s32.totalorder %s19, 1
      %p121 = scmp.ne.s32.totalorder %s116, %s118
      %p122 = scmp.eq.s32.totalorder %s19, 0
      %p123 = por %p121, %p122
      %p124 = scmp.ne.s32.totalorder %s116, %s118
      %p125 = scmp.eq.s32.totalorder %s24, 1
      %p126 = por %p124, %p125
      %p127 = scmp.ne.s32.totalorder %s118, %s119
      %p128 = scmp.eq.s32.totalorder %s24, 0
      %p129 = por %p127, %p128
      %p130 = scmp.ne.s32.totalorder %s118, %s119
      %p131 = scmp.eq.s32.totalorder %s25, 1
      %p132 = por %p130, %p131
      %p134 = scmp.ne.s32.totalorder %s119, %s133
      %p135 = scmp.eq.s32.totalorder %s25, 0
      %p136 = por %p134, %p135
      %s138 = sadd.s32 %s137, 1
      %p141 = scmp.eq.s32.totalorder %s19, 1
      %p142 = scmp.ne.s32.totalorder %s137, %s139
      %p143 = scmp.eq.s32.totalorder %s19, 0
      %p144 = por %p142, %p143
      %p145 = scmp.ne.s32.totalorder %s137, %s139
      %p146 = scmp.eq.s32.totalorder %s24, 1
      %p147 = por %p145, %p146
      %p148 = scmp.ne.s32.totalorder %s139, %s140
      %p149 = scmp.eq.s32.totalorder %s24, 0
      %p150 = por %p148, %p149
      %p151 = scmp.ne.s32.totalorder %s139, %s140
      %p152 = scmp.eq.s32.totalorder %s25, 1
      %p153 = por %p151, %p152
      %p155 = scmp.ne.s32.totalorder %s140, %s154
      %p156 = scmp.eq.s32.totalorder %s25, 0
      %p157 = por %p155, %p156
      %s159 = sadd.s32 %s158, 1
      %p162 = scmp.eq.s32.totalorder %s19, 1
      %p163 = scmp.ne.s32.totalorder %s158, %s160
      %p164 = scmp.eq.s32.totalorder %s19, 0
      %p165 = por %p163, %p164
      %p166 = scmp.ne.s32.totalorder %s158, %s160
      %p167 = scmp.eq.s32.totalorder %s24, 1
      %p168 = por %p166, %p167
      %p169 = scmp.ne.s32.totalorder %s160, %s161
      %p170 = scmp.eq.s32.totalorder %s24, 0
      %p171 = por %p169, %p170
      %p172 = scmp.ne.s32.totalorder %s160, %s161
      %p173 = scmp.eq.s32.totalorder %s25, 1
      %p174 = por %p172, %p173
      %p176 = scmp.ne.s32.totalorder %s161, %s175
      %p177 = scmp.eq.s32.totalorder %s25, 0
      %p178 = por %p176, %p177
      %s179 = ssub.s32 %s19, %s26
      %p180 = scmp.eq.s32.totalorder %s179, 0
      %s182 = sadd.s32 %s181, 1
      %s183 = scalar_select %p180, %s181, %s182
      %p186 = pneg %p180
      %p187 = scmp.eq.s32.totalorder %s19, 1
      %p188 = por %p186, %p187
      %p189 = scmp.ne.s32.totalorder %s181, %s184
      %p190 = scmp.eq.s32.totalorder %s19, 0
      %p191 = por %p189, %p190
      %p192 = scmp.ne.s32.totalorder %s181, %s184
      %p193 = scmp.eq.s32.totalorder %s24, 1
      %p194 = por %p192, %p193
      %p195 = scmp.ne.s32.totalorder %s184, %s185
      %p196 = scmp.eq.s32.totalorder %s24, 0
      %p197 = por %p195, %p196
      %p198 = scmp.ne.s32.totalorder %s184, %s185
      %p199 = scmp.eq.s32.totalorder %s25, 1
      %p200 = por %p198, %p199
      %p202 = scmp.ne.s32.totalorder %s185, %s201
      %p203 = scmp.eq.s32.totalorder %s25, 0
      %p204 = por %p202, %p203
      %p205 = scmp.le.s32.totalorder 1, %s19
      %p206 = scmp.lt.s32.totalorder %s19, 3
      %p207 = pnand %p205, %p206
      %p208 = pneg %p207
      // Predicated region
      $region9: #{tpu_custom_call.1} parent=5 // pred_check
        _
      $region10: #{tpu_custom_call.1} parent=5 // pred_check_branch
        %210 = sbr.rel (%p207) target = $region12
      $region11: #{tpu_custom_call.1} parent=5 // pred_region
        %s211 = ssub.s32 %s19, 1
        // Predicated region
        $region13: #{tpu_custom_call.1} parent=11 // pred_check
          %p212 = pneg %p66
        $region14: #{tpu_custom_call.1} parent=11 // pred_check_branch
          %214 = sbr.rel (%p212) target = $region16
        $region15: #{tpu_custom_call.1} parent=11 // pred_region
          _
        $region16: #{tpu_custom_call.1} parent=11 // pred_fallthru
          _
        // Predicated region
        $region17: #{tpu_custom_call.1} parent=11 // pred_check
          %p215 = pneg %p87
        $region18: #{tpu_custom_call.1} parent=11 // pred_check_branch
          %217 = sbr.rel (%p215) target = $region20
        $region19: #{tpu_custom_call.1} parent=11 // pred_region
          _
        $region20: #{tpu_custom_call.1} parent=11 // pred_fallthru
          _
        // Predicated region
        $region21: #{tpu_custom_call.1} parent=11 // pred_check
          %p218 = pneg %p108
        $region22: #{tpu_custom_call.1} parent=11 // pred_check_branch
          %220 = sbr.rel (%p218) target = $region24
        $region23: #{tpu_custom_call.1} parent=11 // pred_region
          _
        $region24: #{tpu_custom_call.1} parent=11 // pred_fallthru
          _
        // Predicated region
        $region25: #{tpu_custom_call.1} parent=11 // pred_check
          %p221 = pneg %p129
        $region26: #{tpu_custom_call.1} parent=11 // pred_check_branch
          %223 = sbr.rel (%p221) target = $region28
        $region27: #{tpu_custom_call.1} parent=11 // pred_region
          _
        $region28: #{tpu_custom_call.1} parent=11 // pred_fallthru
          _
        // Predicated region
        $region29: #{tpu_custom_call.1} parent=11 // pred_check
          %p224 = pneg %p150
        $region30: #{tpu_custom_call.1} parent=11 // pred_check_branch
          %226 = sbr.rel (%p224) target = $region32
        $region31: #{tpu_custom_call.1} parent=11 // pred_region
          _
        $region32: #{tpu_custom_call.1} parent=11 // pred_fallthru
          _
        // Predicated region
        $region33: #{tpu_custom_call.1} parent=11 // pred_check
          %p227 = pneg %p171
        $region34: #{tpu_custom_call.1} parent=11 // pred_check_branch
          %229 = sbr.rel (%p227) target = $region36
        $region35: #{tpu_custom_call.1} parent=11 // pred_region
          _
        $region36: #{tpu_custom_call.1} parent=11 // pred_fallthru
          _
      $region12: #{tpu_custom_call.1} parent=5 // pred_fallthru
        _
      %p230 = scmp.lt.s32.totalorder %s19, 2
      // Predicated region
      $region37: #{tpu_custom_call.1} parent=5 // pred_check
        %p231 = pneg %p230
      $region38: #{tpu_custom_call.1} parent=5 // pred_check_branch
        %233 = sbr.rel (%p231) target = $region40
      $region39: #{tpu_custom_call.1} parent=5 // pred_region
        // Predicated region
        $region41: #{tpu_custom_call.1} parent=39 // pred_check
          %p234 = pneg %p39
        $region42: #{tpu_custom_call.1} parent=39 // pred_check_branch
          %236 = sbr.rel (%p234) target = $region44
        $region43: #{tpu_custom_call.1} parent=39 // pred_region
          %s237 = sand.u32 %s29, 1
          %s238 = scalar_lea.sflag [#allocation3], %s237
          %s239 = sand.u32 %s29, 1
          %s240 = smul.addr %s239, 8
          %s241 = scalar_lea.vmem [#allocation2], %s240
          %243 = vsyncadd %s238, 0
          %s244 = smul.addr %s19, 8
          %s245 = scalar_lea.hbm %s0, %s244
          %s247 = sshll.u32 %s245, 4
          %s248 = int_to_ptr.hbm [resolvable:$true] %s247
          %s249 = sshll.u32 %s241, 4
          %s250 = int_to_ptr.vmem [resolvable:$true] %s249
          %252 = dma.hbm_to_vmem [thread:$0]  %s248, 128, %s250, %s238
        $region44: #{tpu_custom_call.1} parent=39 // pred_fallthru
          _
      $region40: #{tpu_custom_call.1} parent=5 // pred_fallthru
        _
      %p253 = scmp.le.s32.totalorder 1, %s19
      %p254 = scmp.lt.s32.totalorder %s19, 3
      %p255 = pnand %p253, %p254
      %p256 = pneg %p255
      // Predicated region
      $region45: #{tpu_custom_call.1} parent=5 // pred_check
        _
      $region46: #{tpu_custom_call.1} parent=5 // pred_check_branch
        %258 = sbr.rel (%p255) target = $region48
      $region47: #{tpu_custom_call.1} parent=5 // pred_region
        %s259 = ssub.s32 %s19, 1
        %s260 = sand.u32 %s32, 1
        %s261 = scalar_lea.sflag [#allocation3], %s260
        %s262 = sand.u32 %s32, 1
        %s263 = smul.addr %s262, 8
        %s264 = scalar_lea.vmem [#allocation2], %s263
        // Predicated region
        $region49: #{tpu_custom_call.1} parent=47 // pred_check
          %p265 = pneg %p45
        $region50: #{tpu_custom_call.1} parent=47 // pred_check_branch
          %267 = sbr.rel (%p265) target = $region52
        $region51: #{tpu_custom_call.1} parent=47 // pred_region
          %269 = dma.done %s261, 128
        $region52: #{tpu_custom_call.1} parent=47 // pred_fallthru
          _
        %s270 = sand.u32 %s32, 1
        %s271 = scalar_lea.sflag [#allocation3], %s270
        %s272 = sand.u32 %s32, 1
        %s273 = smul.addr %s272, 8
        %s274 = scalar_lea.vmem [#allocation2], %s273
        %p275 = pneg %p45
        %p276 = pneg %p42
        %p277 = pneg %p66
        %p278 = pneg %p63
        %p279 = pneg %p87
        %p280 = pneg %p84
        %p281 = pneg %p108
        %p282 = pneg %p105
        %p283 = pneg %p129
        %p284 = pneg %p126
        %p285 = pneg %p150
        %p286 = pneg %p147
        %p287 = pneg %p171
        %p288 = pneg %p168
        %p289 = pneg %p197
        %p290 = pneg %p194
        %s291 = sand.u32 %s184, 1
        %s292 = scalar_lea.sflag [#allocation4], %s291
        %s293 = sand.u32 %s184, 1
        %s294 = smul.addr %s293, 8
        %s295 = scalar_lea.vmem [#allocation5], %s294
        %v296 = vld [vmem:[%s264] sm:$0xff]
        %v297 = vld [vmem:[%s1] sm:$0xff]
        %v298 = vld [vmem:[%s1 + $0x8] sm:$0xff]
        %v299 = vld [vmem:[%s1 + $0x10] sm:$0x3f]
        %v300 = vld [vmem:[%s2] sm:$0x1]
        %v302 = vperm.slane %v300, 0
        %vm304 = vcmask 179200
        %v306 = vsel %vm304, %v296, 0
        %vm308 = vcmask 1045504
        %v310 = vsel %vm308, %v299, 0
        %312 = vmatpush.msra.mxu0 0.0
        %313 = vmatpush.msra.mxu0 0.0
        %314 = vmatpush.msra.mxu0 0.0
        %315 = vmatpush.msra.mxu0 0.0
        %316 = vmatpush.msra.mxu0 0.0
        %317 = vmatpush.msra.mxu0 0.0
        %318 = vmatpush.msra.mxu0 0.0
        %319 = vmatpush.msra.mxu0 0.0
        %320 = vmatpush.msra.mxu0 0.0
        %321 = vmatpush.msra.mxu0 0.0
        %322 = vmatpush.msra.mxu0 0.0
        %323 = vmatpush.msra.mxu0 0.0
        %324 = vmatpush.msra.mxu0 0.0
        %325 = vmatpush.msra.mxu0 %v310
        %326 = vmatpush.msra.mxu0 %v298
        %327 = vmatpush.msra.mxu0 %v297
        %328 = vmatmul.f32.gmra.mxu0 %v306
        %v329 = vpop.f32.mrf.mxu0
        %v330 = vadd.f32 %v302, %v329
        %331 = vdwg.mxu0
        %v332 = vmax.f32 %v330, 0.0
        %v333 = vld [vmem:[%s3] sm:$0xff]
        %v334 = vld [vmem:[%s3 + $0x8] sm:$0xff]
        %v335 = vld [vmem:[%s3 + $0x10] sm:$0xff]
        %v336 = vld [vmem:[%s3 + $0x18] sm:$0xff]
        %v337 = vld [vmem:[%s3 + $0x20] sm:$0xff]
        %v338 = vld [vmem:[%s3 + $0x28] sm:$0xff]
        %v339 = vld [vmem:[%s3 + $0x30] sm:$0xff]
        %v340 = vld [vmem:[%s3 + $0x38] sm:$0xff]
        %v341 = vld [vmem:[%s3 + $0x40] sm:$0xff]
        %v342 = vld [vmem:[%s3 + $0x48] sm:$0xff]
        %v343 = vld [vmem:[%s3 + $0x50] sm:$0xff]
        %v344 = vld [vmem:[%s3 + $0x58] sm:$0xff]
        %v345 = vld [vmem:[%s3 + $0x60] sm:$0xff]
        %v346 = vld [vmem:[%s3 + $0x68] sm:$0xff]
        %v347 = vld [vmem:[%s3 + $0x70] sm:$0xff]
        %v348 = vld [vmem:[%s3 + $0x78] sm:$0xff]
        %v349 = vld [vmem:[%s4] sm:$0x1]
        %v351 = vperm.slane %v349, 0
        %353 = vmatpush.msra.mxu0 %v348
        %354 = vmatpush.msra.mxu0 %v347
        %355 = vmatpush.msra.mxu0 %v346
        %356 = vmatpush.msra.mxu0 %v345
        %357 = vmatpush.msra.mxu0 %v344
        %358 = vmatpush.msra.mxu0 %v343
        %359 = vmatpush.msra.mxu0 %v342
        %360 = vmatpush.msra.mxu0 %v341
        %361 = vmatpush.msra.mxu0 %v340
        %362 = vmatpush.msra.mxu0 %v339
        %363 = vmatpush.msra.mxu0 %v338
        %364 = vmatpush.msra.mxu0 %v337
        %365 = vmatpush.msra.mxu0 %v336
        %366 = vmatpush.msra.mxu0 %v335
        %367 = vmatpush.msra.mxu0 %v334
        %368 = vmatpush.msra.mxu0 %v333
        %369 = vmatmul.f32.gmra.mxu0 %v332
        %v370 = vpop.f32.mrf.mxu0
        %v371 = vadd.f32 %v351, %v370
        %372 = vdwg.mxu0
        %v373 = vmax.f32 %v371, 0.0
        %v374 = vld [vmem:[%s5] sm:$0xff]
        %v375 = vld [vmem:[%s5 + $0x8] sm:$0xff]
        %v376 = vld [vmem:[%s5 + $0x10] sm:$0xff]
        %v377 = vld [vmem:[%s5 + $0x18] sm:$0xff]
        %v378 = vld [vmem:[%s5 + $0x20] sm:$0xff]
        %v379 = vld [vmem:[%s5 + $0x28] sm:$0xff]
        %v380 = vld [vmem:[%s5 + $0x30] sm:$0xff]
        %v381 = vld [vmem:[%s5 + $0x38] sm:$0xff]
        %v382 = vld [vmem:[%s5 + $0x40] sm:$0xff]
        %v383 = vld [vmem:[%s5 + $0x48] sm:$0xff]
        %v384 = vld [vmem:[%s5 + $0x50] sm:$0xff]
        %v385 = vld [vmem:[%s5 + $0x58] sm:$0xff]
        %v386 = vld [vmem:[%s5 + $0x60] sm:$0xff]
        %v387 = vld [vmem:[%s5 + $0x68] sm:$0xff]
        %v388 = vld [vmem:[%s5 + $0x70] sm:$0xff]
        %v389 = vld [vmem:[%s5 + $0x78] sm:$0xff]
        %v390 = vld [vmem:[%s6] sm:$0x1]
        %v392 = vperm.slane %v390, 0
        %394 = vmatpush.msra.mxu0 %v389
        %395 = vmatpush.msra.mxu0 %v388
        %396 = vmatpush.msra.mxu0 %v387
        %397 = vmatpush.msra.mxu0 %v386
        %398 = vmatpush.msra.mxu0 %v385
        %399 = vmatpush.msra.mxu0 %v384
        %400 = vmatpush.msra.mxu0 %v383
        %401 = vmatpush.msra.mxu0 %v382
        %402 = vmatpush.msra.mxu0 %v381
        %403 = vmatpush.msra.mxu0 %v380
        %404 = vmatpush.msra.mxu0 %v379
        %405 = vmatpush.msra.mxu0 %v378
        %406 = vmatpush.msra.mxu0 %v377
        %407 = vmatpush.msra.mxu0 %v376
        %408 = vmatpush.msra.mxu0 %v375
        %409 = vmatpush.msra.mxu0 %v374
        %410 = vmatmul.f32.gmra.mxu0 %v373
        %v411 = vpop.f32.mrf.mxu0
        %v412 = vadd.f32 %v392, %v411
        %413 = vdwg.mxu0
        %vm414 = vcmask 162816
        %415 = vst.msk [vmem:[%s295] sm:$0xff] %vm414, %v412
        %s416 = sand.u32 %s184, 1
        %s417 = scalar_lea.sflag [#allocation4], %s416
        %s418 = sand.u32 %s184, 1
        %s419 = smul.addr %s418, 8
        %s420 = scalar_lea.vmem [#allocation5], %s419
        // Predicated region
        $region53: #{tpu_custom_call.1} parent=47 // pred_check
          %p421 = pneg %p194
        $region54: #{tpu_custom_call.1} parent=47 // pred_check_branch
          %423 = sbr.rel (%p421) target = $region56
        $region55: #{tpu_custom_call.1} parent=47 // pred_region
          %425 = vsyncadd %s417, 0
          %s426 = smul.addr %s24, 8
          %s427 = scalar_lea.hbm %s7, %s426
          %s429 = sshll.u32 %s420, 4
          %s430 = int_to_ptr.vmem [resolvable:$true] %s429
          %s431 = sshll.u32 %s427, 4
          %s432 = int_to_ptr.hbm [resolvable:$true] %s431
          %434 = dma.vmem_to_hbm [thread:$0]  %s430, 128, %s432, %s417
        $region56: #{tpu_custom_call.1} parent=47 // pred_fallthru
          _
      $region48: #{tpu_custom_call.1} parent=5 // pred_fallthru
        _
      %p435 = scmp.le.s32.totalorder 2, %s19
      // Predicated region
      $region57: #{tpu_custom_call.1} parent=5 // pred_check
        %p436 = pneg %p435
      $region58: #{tpu_custom_call.1} parent=5 // pred_check_branch
        %438 = sbr.rel (%p436) target = $region60
      $region59: #{tpu_custom_call.1} parent=5 // pred_region
        %s439 = ssub.s32 %s19, 2
        // Predicated region
        $region61: #{tpu_custom_call.1} parent=59 // pred_check
          %p440 = pneg %p200
        $region62: #{tpu_custom_call.1} parent=59 // pred_check_branch
          %442 = sbr.rel (%p440) target = $region64
        $region63: #{tpu_custom_call.1} parent=59 // pred_region
          %s443 = sand.u32 %s185, 1
          %s444 = scalar_lea.sflag [#allocation4], %s443
          %s445 = sand.u32 %s185, 1
          %s446 = smul.addr %s445, 8
          %s447 = scalar_lea.vmem [#allocation5], %s446
          %449 = dma.done %s444, 128
        $region64: #{tpu_custom_call.1} parent=59 // pred_fallthru
          _
      $region60: #{tpu_custom_call.1} parent=5 // pred_fallthru
        _
    $region6: #{tpu_custom_call.1} parent=1 // loop_footer
      %s23 = sadd.s32 1, %s19
    $region7: #{tpu_custom_call.1} parent=1 // loop_footer_branch
      %18 = sbr.rel target = $region3
    $region8: #{tpu_custom_call.1} parent=1 // loop_exit
      _
    %450 = vsyncpa [#allocation3], 1
    %s451 = scalar_lea.sflag [#allocation3], 1
    %452 = vsyncpa %s451, 1
    %453 = vsyncpa [#allocation4], 1
    %s454 = scalar_lea.sflag [#allocation4], 1
    %455 = vsyncpa %s454, 1

</llo_original>
